<compile_context>
chip_gen: v7x
topology: tpu7x:2x2x1
jax: 0.10.0
libtpu: 0.0.40
codegen_flags: <defaults>
</compile_context>

<pallas_src>
import math
from typing import Any, Callable, Optional

import jax
import jax.numpy as jnp
from jax.experimental import pallas as pl
from jax.experimental.pallas import tpu as pltpu


# ----------------------------------------------------------------------------
# Pallas kernel: elementwise swish  y = x * sigmoid(x)
# ----------------------------------------------------------------------------
def _swish_kernel(x_ref, o_ref):
    x = x_ref[...]
    if x.dtype == jnp.bfloat16:
        # v6e/v7x have bf16 VPU + EUP: stay in bf16 (halves vreg pressure,
        # drops two casts).  Mosaic legalizes bf16 math on v5e.
        xc = x
    else:
        xc = x.astype(jnp.float32)
    half = jnp.asarray(0.5, xc.dtype)
    # sigmoid(x) = 0.5 * (1 + tanh(x / 2)) -> single EUP transcendental,
    # the rest is cheap VALU work (kernel is HBM-bound anyway).
    y = xc * (half + half * jnp.tanh(half * xc))
    o_ref[...] = y.astype(o_ref.dtype)


# ~4 MiB blocks: well past the per-grid-step overhead knee on v5e/v6e and
# keeps the ~0.35 us fixed step cost to ~5-10% of DMA time even at v7x's
# 3.2 TB/s.  2 arrays x 2 buffers x 4 MiB = 16 MiB, covered by the explicit
# vmem limit below on every generation (v7x physical VMEM is 64 MiB).
_TARGET_BLOCK_BYTES = 4 * 1024 * 1024
_VMEM_LIMIT_BYTES = 48 * 1024 * 1024  # > 16 MiB needed, < v7x 64 MiB physical


def _swish_ref(x: jnp.ndarray) -> jnp.ndarray:
    """Plain-XLA swish for tiny tails (< 128 elements)."""
    return (x * jax.nn.sigmoid(x.astype(jnp.float32)).astype(x.dtype)).astype(x.dtype)


def _choose_2d_view(n: int):
    """Pick a lane-dense (R, C) view of n elements; n must be a multiple of 128.

    Prefer larger C (up to 2048) while keeping at least 8 rows; always a
    pad-free, metadata-only reshape.
    """
    for c in (2048, 1024, 512, 256, 128):
        if n % c == 0 and n // c >= 8:
            return n // c, c
    return n // 128, 128


def _swish_pallas_2d(x2d: jnp.ndarray) -> jnp.ndarray:
    """Run the elementwise kernel over a 2D (R, C) array tiled along rows."""
    R, C = x2d.shape
    itemsize = jnp.dtype(x2d.dtype).itemsize
    bytes_per_row = C * itemsize

    # Rows per block sized to ~_TARGET_BLOCK_BYTES, kept a multiple of 32 so
    # sub-32-bit sublane packing (bf16: 16 rows, int8/fp8: 32 rows) is never
    # split at a block boundary.  Pallas handles the ragged last block.
    tr = _TARGET_BLOCK_BYTES // bytes_per_row
    tr = max(32, (tr // 32) * 32)
    if tr >= R:
        tr = R  # full row extent: always a legal block shape

    grid = (pl.cdiv(R, tr),)
    n = R * C
    cost = pl.CostEstimate(
        flops=4 * n,
        transcendentals=n,
        bytes_accessed=2 * n * itemsize,
    )

    return pl.pallas_call(
        _swish_kernel,
        out_shape=jax.ShapeDtypeStruct((R, C), x2d.dtype),
        grid_spec=pltpu.PrefetchScalarGridSpec(
            num_scalar_prefetch=0,
            grid=grid,
            in_specs=[pl.BlockSpec((tr, C), lambda i: (i, 0))],
            out_specs=pl.BlockSpec((tr, C), lambda i: (i, 0)),
        ),
        # TODO(synk): on v7x verify with xprof that "parallel" actually shards
        # the row axis across both TensorCores; if not, switch to
        # pltpu.CORE_PARALLEL / a core_map split.
        compiler_params=pltpu.CompilerParams(
            dimension_semantics=("parallel",),
            vmem_limit_bytes=_VMEM_LIMIT_BYTES,
        ),
        cost_estimate=cost,
    )(x2d)


def swish_pallas(x: jnp.ndarray) -> jnp.ndarray:
    """Elementwise x * sigmoid(x) for any-rank input (NCHW supported)."""
    orig_shape = x.shape
    n = math.prod(orig_shape) if orig_shape else 1
    if n == 0:
        return x

    flat = x.reshape(-1)
    n_main = (n // 128) * 128

    if n_main == 0:
        # Fewer than 128 elements: lane-sparse kernel stores would be slower
        # than just doing it in XLA.
        return _swish_ref(flat).reshape(orig_shape)

    R, C = _choose_2d_view(n_main)
    y_main = _swish_pallas_2d(flat[:n_main].reshape(R, C)).reshape(-1)

    if n_main == n:
        # Common case: metadata-only reshapes, single kernel, no copies.
        return y_main.reshape(orig_shape)

    # Pathological element count: 128-aligned prefix through the kernel,
    # <128-element tail in plain XLA (avoids masked vst.msk partial stores).
    y_tail = _swish_ref(flat[n_main:])
    return jnp.concatenate([y_main, y_tail]).reshape(orig_shape)


# ----------------------------------------------------------------------------
# Lambda module (JAX equivalent of the PyTorch nn.Module)
# ----------------------------------------------------------------------------
class Lambda:
    """JAX/Pallas equivalent of ptlearn Lambda: forward(*a, **k) = fn(*a, **k)."""

    def __init__(self, fn: Callable, name: Optional[str] = None):
        self.name = name
        self.fn = fn

    def extra_repr(self) -> str:
        return "" if self.name is None else self.name

    def __call__(self, *args: Any, **kwargs: Any) -> Any:
        # TODO(synk): arbitrary user callables are dispatched in Python, as in
        # the PyTorch module; only the wrapped fn's body can be a Pallas kernel.
        return self.fn(*args, **kwargs)


# ----------------------------------------------------------------------------
# Demo / self-test
# ----------------------------------------------------------------------------
if __name__ == "__main__":
    key = jax.random.PRNGKey(0)

    # NCHW input, small shapes.
    x = jax.random.normal(key, (2, 4, 16, 16), dtype=jnp.float32)

    # Instantiate Lambda with the Pallas-backed elementwise fn (swish).
    module = Lambda(swish_pallas, name="swish")

    y = module(x)
    y = jax.block_until_ready(y)

    # Reference check against plain JAX.  The tanh formulation of sigmoid is
    # exact up to a few f32 ulps.
    y_ref = x * jax.nn.sigmoid(x)
    assert y.shape == x.shape and y.dtype == x.dtype
    assert jnp.allclose(y, y_ref, atol=1e-5, rtol=1e-5), "mismatch vs reference"

    # Hardened-path check: element count not a multiple of 128 (128-aligned
    # prefix through the kernel + tiny tail in XLA).
    x_odd = jax.random.normal(jax.random.PRNGKey(1), (5, 37), dtype=jnp.float32)
    y_odd = jax.block_until_ready(module(x_odd))
    y_odd_ref = x_odd * jax.nn.sigmoid(x_odd)
    assert y_odd.shape == x_odd.shape and y_odd.dtype == x_odd.dtype
    assert jnp.allclose(y_odd, y_odd_ref, atol=1e-5, rtol=1e-5), "mismatch (odd shape)"

    print("KERNEL_OK")
</pallas_src>

<mosaic_0001>
module attributes {stable_mosaic.version = 11 : i64} {
  func.func @_swish_kernel(%arg0: i32, %arg1: memref<8x256xf32, #tpu.memory_space<vmem>>, %arg2: memref<8x256xf32, #tpu.memory_space<vmem>>) attributes {dimension_semantics = [#tpu.dimension_semantics<parallel>], iteration_bounds = array<i64: 1>, scalar_prefetch = 0 : i64, scratch_operands = 0 : i64, tpu.core_type = #tpu.core_type<tc>, window_params = [{transform_indices = @transform_0, window_bounds = array<i64: 8, 256>}, {transform_indices = @transform_1, window_bounds = array<i64: 8, 256>}]} {
    %c0 = arith.constant 0 : index
    %c0_0 = arith.constant 0 : index
    %0 = vector.load %arg1[%c0, %c0_0] : memref<8x256xf32, #tpu.memory_space<vmem>>, vector<8x256xf32>
    %cst = arith.constant 5.000000e-01 : f32
    %1 = vector.broadcast %cst : f32 to vector<8x256xf32>
    %2 = arith.mulf %1, %0 : vector<8x256xf32>
    %3 = math.tanh %2 : vector<8x256xf32>
    %cst_1 = arith.constant 5.000000e-01 : f32
    %4 = vector.broadcast %cst_1 : f32 to vector<8x256xf32>
    %5 = arith.mulf %4, %3 : vector<8x256xf32>
    %cst_2 = arith.constant 5.000000e-01 : f32
    %6 = vector.broadcast %cst_2 : f32 to vector<8x256xf32>
    %7 = arith.addf %6, %5 : vector<8x256xf32>
    %8 = arith.mulf %0, %7 : vector<8x256xf32>
    %c0_3 = arith.constant 0 : index
    %c0_4 = arith.constant 0 : index
    %9 = vector.load %arg2[%c0_3, %c0_4] : memref<8x256xf32, #tpu.memory_space<vmem>>, vector<8x256xf32>
    tpu.vector_store %arg2[%c0_3, %c0_4], %8 {strides = array<i32>} : memref<8x256xf32, #tpu.memory_space<vmem>>, vector<8x256xf32>,
    return
  }
  func.func @transform_0(%arg0: i32) -> (i32, i32) {
    %c0_i32 = arith.constant 0 : i32
    %c0_i32_0 = arith.constant 0 : i32
    return %arg0, %c0_i32 : i32, i32
  }
  func.func @transform_1(%arg0: i32) -> (i32, i32) {
    %c0_i32 = arith.constant 0 : i32
    %c0_i32_0 = arith.constant 0 : i32
    return %arg0, %c0_i32 : i32, i32
  }
}

</mosaic_0001>

<llo_original>
// kernel: tpu_custom_call.1
$region0: #{tpu_custom_call.1}
  #allocation0 [shape = 'u32[]', space=smem, size = 0x4, offset = 0x4, fixed_abs, tag = 'smem constant byte address 0x4 - core index']
  #allocation1 [shape = 'u32[144,128]{1,0:T(1,128)}', space=vmem, size = 0x12000, scoped, tag = 'internal scratch']
  %s0 = inlined_call_operand.hbm [shape: f32[8,256], index: 0, kind: input, shape index: {}]
  %s1 = inlined_call_operand.hbm [shape: f32[8,256], index: 1, kind: output, shape index: {}]
  %s2 = sld [smem:[#allocation0]]
  $region18: #{tpu_custom_call.1} parent=0
    _
  %s4 = ssub.s32 1, %s2
  %s5 = scalar_select 0, %s4, %s2
  $region1: #{tpu_custom_call.1} parent=0
    #allocation2 [shape = 'u8[8192]{0}', space=vmem, size = 0x2000, scoped, tag = 'input window, operand 0, single buffered']
    #allocation3 [shape = 's32[1]{0}', space=sflag, size = 0x4, scoped, tag = 'scoped memory for tpu_custom_call.1']
    #allocation4 [shape = 's32[1]{0}', space=sflag, size = 0x4, scoped, tag = 'scoped memory for tpu_custom_call.1']
    #allocation5 [shape = 'u8[8192]{0}', space=vmem, size = 0x2000, scoped, tag = 'output window, operand 0, single buffered']
    %6 = vsyncpa [#allocation3], 0
    %7 = vsyncpa [#allocation4], 0
    // Predicated region
    $region2: #{tpu_custom_call.1} parent=1 // pred_check
      _
    $region3: #{tpu_custom_call.1} parent=1 // pred_check_branch
      %9 = sbr.rel (0) target = $region5
    $region4: #{tpu_custom_call.1} parent=1 // pred_region
      %s11 = ssub.s32 256, 256
      %12 = vsyncadd [#allocation3], %s11
      %s14 = sshll.u32 [#allocation2], 4
      %s15 = int_to_ptr.vmem [resolvable:$true] %s14
      %17 = dma.hbm_to_vmem [thread:$0]  %s0, 256, %s15, [#allocation3]
    $region5: #{tpu_custom_call.1} parent=1 // pred_fallthru
      _
    // Predicated region
    $region6: #{tpu_custom_call.1} parent=1 // pred_check
      _
    $region7: #{tpu_custom_call.1} parent=1 // pred_check_branch
      %19 = sbr.rel (0) target = $region9
    $region8: #{tpu_custom_call.1} parent=1 // pred_region
      %20 = dma.done [#allocation3], 256
    $region9: #{tpu_custom_call.1} parent=1 // pred_fallthru
      _
    %v21 = vld [vmem:[#allocation2] sm:$0xff]
    %v22 = vld [vmem:[#allocation2 + $0x8] sm:$0xff]
    %v23 = vmul.f32 %v21, 0.5
    %v24 = vmul.f32 %v22, 0.5
    %v25 = vtanh.pop %v23
    %v26 = vtanh.pop %v24
    %v27 = vmul.f32 %v25, 0.5
    %v28 = vmul.f32 %v26, 0.5
    %v29 = vadd.f32 %v27, 0.5
    %v30 = vadd.f32 %v28, 0.5
    %v31 = vmul.f32 %v21, %v29
    %v32 = vmul.f32 %v22, %v30
    %33 = vst [vmem:[#allocation5] sm:$0xff] %v31
    %34 = vst [vmem:[#allocation5 + $0x8] sm:$0xff] %v32
    // Predicated region
    $region10: #{tpu_custom_call.1} parent=1 // pred_check
      _
    $region11: #{tpu_custom_call.1} parent=1 // pred_check_branch
      %36 = sbr.rel (0) target = $region13
    $region12: #{tpu_custom_call.1} parent=1 // pred_region
      %s38 = ssub.s32 256, 256
      %39 = vsyncadd [#allocation4], %s38
      %s41 = sshll.u32 [#allocation5], 4
      %s42 = int_to_ptr.vmem [resolvable:$true] %s41
      %44 = dma.vmem_to_hbm [thread:$0]  %s42, 256, %s1, [#allocation4]
    $region13: #{tpu_custom_call.1} parent=1 // pred_fallthru
      _
    // Predicated region
    $region14: #{tpu_custom_call.1} parent=1 // pred_check
      _
    $region15: #{tpu_custom_call.1} parent=1 // pred_check_branch
      %46 = sbr.rel (0) target = $region17
    $region16: #{tpu_custom_call.1} parent=1 // pred_region
      %47 = dma.done [#allocation4], 256
    $region17: #{tpu_custom_call.1} parent=1 // pred_fallthru
      _
    %48 = vsyncpa [#allocation3], 1
    %49 = vsyncpa [#allocation4], 1

</llo_original>
